<compile_context>
chip_gen: v5e
topology: v5e:2x2
jax: 0.10.0
libtpu: 0.0.40
codegen_flags: <defaults>
</compile_context>

<pallas_src>
import jax
import jax.numpy as jnp
from jax.experimental import pallas as pl
from jax.experimental.pallas import tpu as pltpu


_DROP_P = 0.2
# keep w.p. (1 - p):  hash value z is ~uniform over int32 [-2^31, 2^31);
# P(z < INT32_MIN + round(p * 2^32)) = p  ->  keep = z >= threshold.
_DROP_THRESH = -(2 ** 31) + int(round(_DROP_P * (2 ** 32)))  # == -1288490189


def _srl32(v, k):
    """Logical right-shift for int32 (arithmetic shift + mask of sign bits)."""
    return jnp.bitwise_and(jnp.right_shift(v, k), (1 << (32 - k)) - 1)


def _hash_i32(z):
    """splitmix32-style finalizer on int32 (wrapping arithmetic)."""
    z = z ^ _srl32(z, 16)
    z = z * jnp.int32(0x7FEB352D)
    z = z ^ _srl32(z, 15)
    z = z * jnp.int32(-2073777525)  # 0x846CA68B as signed int32
    z = z ^ _srl32(z, 16)
    return z


def iris_kernel(seed_ref,
                x_ref, w1_ref, b1_ref, w2_ref, b2_ref, w3_ref, b3_ref,
                o_ref):
    # Layout: batch on lanes (last dim), features on sublanes.
    #   x_ref : (4,  TILE_B)    w1: (10, 4)   b1: (10, 1)
    #   h1/h2 : (10, TILE_B)    w2: (10, 10)  b2: (10, 1)
    #   o_ref : (3,  TILE_B)    w3: (3, 10)   b3: (3, 1)
    x = x_ref[...]

    # fc1 + ReLU
    h1 = jnp.dot(w1_ref[...], x, preferred_element_type=jnp.float32)
    h1 = jnp.maximum(h1 + b1_ref[...], 0.0)

    # fc2 + ReLU
    h2 = jnp.dot(w2_ref[...], h1, preferred_element_type=jnp.float32)
    h2 = jnp.maximum(h2 + b2_ref[...], 0.0)

    # Dropout(p=0.2), training semantics (F.dropout default): integer-hash mask
    # keyed on (seed, global batch index, feature index) -> tiling-invariant.
    tile_b = h2.shape[1]
    col = pl.program_id(0) * tile_b + jax.lax.broadcasted_iota(jnp.int32, h2.shape, 1)
    row = jax.lax.broadcasted_iota(jnp.int32, h2.shape, 0)
    z = seed_ref[0] + col * jnp.int32(-1640531527) + row * jnp.int32(-2049221013)
    z = _hash_i32(z)
    keep = z >= jnp.int32(_DROP_THRESH)
    h2 = jnp.where(keep, h2 * jnp.float32(1.0 / (1.0 - _DROP_P)), 0.0)

    # fc3 (no activation)
    out = jnp.dot(w3_ref[...], h2, preferred_element_type=jnp.float32)
    o_ref[...] = (out + b3_ref[...]).astype(o_ref.dtype)


def iris_forward(x, params, seed, *, tile_b=1024):
    """x: (B, 4) float32. params: PyTorch-layout weights (out,in), biases (out,1)."""
    B = x.shape[0]
    assert x.shape[1] == 4

    # Lane-aligned batch padding; clamp the tile to the padded batch size.
    lane_pad = 128 * pl.cdiv(B, 128)
    tile_b = min(tile_b, lane_pad)
    b_pad = tile_b * pl.cdiv(B, tile_b)
    grid = b_pad // tile_b

    # Batch-on-lanes: (4, b_pad), zero-padded tail columns (sliced off below).
    x_t = jnp.zeros((4, b_pad), jnp.float32).at[:, :B].set(x.T.astype(jnp.float32))
    seed_arr = jnp.full((1,), seed, dtype=jnp.int32)

    w1, b1 = params["w1"], params["b1"]
    w2, b2 = params["w2"], params["b2"]
    w3, b3 = params["w3"], params["b3"]

    def full_spec(shape):
        return pl.BlockSpec(shape, lambda b, s: (0, 0))

    out_t = pl.pallas_call(
        iris_kernel,
        out_shape=jax.ShapeDtypeStruct((3, b_pad), jnp.float32),
        grid_spec=pltpu.PrefetchScalarGridSpec(
            num_scalar_prefetch=1,               # seed lands in SMEM
            grid=(grid,),
            in_specs=[
                pl.BlockSpec((4, tile_b), lambda b, s: (0, b)),   # x tile
                full_spec(w1.shape), full_spec(b1.shape),
                full_spec(w2.shape), full_spec(b2.shape),
                full_spec(w3.shape), full_spec(b3.shape),
            ],
            out_specs=pl.BlockSpec((3, tile_b), lambda b, s: (0, b)),
        ),
        compiler_params=pltpu.CompilerParams(
            dimension_semantics=("parallel",),   # v7x: shard batch tiles over 2 TCs
        ),
    )(seed_arr, x_t, w1, b1, w2, b2, w3, b3)

    return out_t[:, :B].T


def init_params(key):
    """Deterministic init mimicking nn.Linear's uniform(-1/sqrt(fan_in), 1/sqrt(fan_in))."""
    def linear(k, fan_in, fan_out):
        kw, kb = jax.random.split(k)
        bound = 1.0 / (fan_in ** 0.5)
        # PyTorch layout: weight (out, in); bias stored as (out, 1) for lane-broadcast.
        w = jax.random.uniform(kw, (fan_out, fan_in), jnp.float32, -bound, bound)
        b = jax.random.uniform(kb, (fan_out, 1), jnp.float32, -bound, bound)
        return w, b

    k1, k2, k3 = jax.random.split(key, 3)
    w1, b1 = linear(k1, 4, 10)
    w2, b2 = linear(k2, 10, 10)
    w3, b3 = linear(k3, 10, 3)
    return {"w1": w1, "b1": b1, "w2": w2, "b2": b2, "w3": w3, "b3": b3}


if __name__ == "__main__":
    key = jax.random.PRNGKey(0)
    pkey, xkey = jax.random.split(key)
    params = init_params(pkey)

    B = 8  # small demo batch; wrapper pads to a 128-lane tile internally
    x = jax.random.normal(xkey, (B, 4), dtype=jnp.float32)

    out = iris_forward(x, params, seed=42)
    out = jax.block_until_ready(out)
    assert out.shape == (B, 3) and out.dtype == jnp.float32
    assert bool(jnp.all(jnp.isfinite(out)))
    print("KERNEL_OK")
</pallas_src>

<mosaic_0001>
module attributes {stable_mosaic.version = 11 : i64} {
  func.func @iris_kernel(%arg0: i32, %arg1: memref<1xi32, #tpu.memory_space<smem>>, %arg2: memref<4x128xf32, #tpu.memory_space<vmem>>, %arg3: memref<10x4xf32, #tpu.memory_space<vmem>>, %arg4: memref<10x1xf32, #tpu.memory_space<vmem>>, %arg5: memref<10x10xf32, #tpu.memory_space<vmem>>, %arg6: memref<10x1xf32, #tpu.memory_space<vmem>>, %arg7: memref<3x10xf32, #tpu.memory_space<vmem>>, %arg8: memref<3x1xf32, #tpu.memory_space<vmem>>, %arg9: memref<3x128xf32, #tpu.memory_space<vmem>>) attributes {dimension_semantics = [#tpu.dimension_semantics<parallel>], iteration_bounds = array<i64: 1>, scalar_prefetch = 1 : i64, scratch_operands = 0 : i64, tpu.core_type = #tpu.core_type<tc>, window_params = [{transform_indices = @transform_0, window_bounds = array<i64: 4, 128>}, {pipeline_mode = #tpu.pipeline_mode<synchronous>, transform_indices = @transform_1, window_bounds = array<i64: 10, 4>}, {pipeline_mode = #tpu.pipeline_mode<synchronous>, transform_indices = @transform_2, window_bounds = array<i64: 10, 1>}, {pipeline_mode = #tpu.pipeline_mode<synchronous>, transform_indices = @transform_3, window_bounds = array<i64: 10, 10>}, {pipeline_mode = #tpu.pipeline_mode<synchronous>, transform_indices = @transform_4, window_bounds = array<i64: 10, 1>}, {pipeline_mode = #tpu.pipeline_mode<synchronous>, transform_indices = @transform_5, window_bounds = array<i64: 3, 10>}, {pipeline_mode = #tpu.pipeline_mode<synchronous>, transform_indices = @transform_6, window_bounds = array<i64: 3, 1>}, {transform_indices = @transform_7, window_bounds = array<i64: 3, 128>}]} {
    %c0 = arith.constant 0 : index
    %c0_0 = arith.constant 0 : index
    %0 = vector.load %arg2[%c0, %c0_0] : memref<4x128xf32, #tpu.memory_space<vmem>>, vector<4x128xf32>
    %c0_1 = arith.constant 0 : index
    %c0_2 = arith.constant 0 : index
    %1 = vector.load %arg3[%c0_1, %c0_2] : memref<10x4xf32, #tpu.memory_space<vmem>>, vector<10x4xf32>
    %cst = arith.constant dense<0.000000e+00> : vector<10x128xf32>
    %2 = tpu.matmul %1, %0, %cst {dimension_numbers = #tpu.dot_dimension_numbers<[1], [0], [0], [1], [0, 0, 1, 1], [], []>} : vector<10x4xf32>, vector<4x128xf32>, vector<10x128xf32> -> vector<10x128xf32>
    %c0_3 = arith.constant 0 : index
    %c0_4 = arith.constant 0 : index
    %3 = vector.load %arg4[%c0_3, %c0_4] : memref<10x1xf32, #tpu.memory_space<vmem>>, vector<10x1xf32>
    %4 = vector.broadcast %3 : vector<10x1xf32> to vector<10x128xf32>
    %5 = arith.addf %2, %4 : vector<10x128xf32>
    %cst_5 = arith.constant 0.000000e+00 : f32
    %6 = vector.broadcast %cst_5 : f32 to vector<10x128xf32>
    %7 = arith.maximumf %5, %6 : vector<10x128xf32>
    %c0_6 = arith.constant 0 : index
    %c0_7 = arith.constant 0 : index
    %8 = vector.load %arg5[%c0_6, %c0_7] : memref<10x10xf32, #tpu.memory_space<vmem>>, vector<10x10xf32>
    %cst_8 = arith.constant dense<0.000000e+00> : vector<10x128xf32>
    %9 = tpu.matmul %8, %7, %cst_8 {dimension_numbers = #tpu.dot_dimension_numbers<[1], [0], [0], [1], [0, 0, 1, 1], [], []>} : vector<10x10xf32>, vector<10x128xf32>, vector<10x128xf32> -> vector<10x128xf32>
    %c0_9 = arith.constant 0 : index
    %c0_10 = arith.constant 0 : index
    %10 = vector.load %arg6[%c0_9, %c0_10] : memref<10x1xf32, #tpu.memory_space<vmem>>, vector<10x1xf32>
    %11 = vector.broadcast %10 : vector<10x1xf32> to vector<10x128xf32>
    %12 = arith.addf %9, %11 : vector<10x128xf32>
    %cst_11 = arith.constant 0.000000e+00 : f32
    %13 = vector.broadcast %cst_11 : f32 to vector<10x128xf32>
    %14 = arith.maximumf %12, %13 : vector<10x128xf32>
    %c128_i32 = arith.constant 128 : i32
    %15 = arith.muli %arg0, %c128_i32 : i32
    %16 = tpu.iota {dimensions = array<i32: 1>} : vector<10x128xi32>
    %17 = vector.broadcast %15 : i32 to vector<10x128xi32>
    %18 = arith.addi %17, %16 : vector<10x128xi32>
    %19 = tpu.iota {dimensions = array<i32: 0>} : vector<10x128xi32>
    %c0_12 = arith.constant 0 : index
    %20 = memref.load %arg1[%c0_12] : memref<1xi32, #tpu.memory_space<smem>>
    %c-1640531527_i32 = arith.constant -1640531527 : i32
    %21 = vector.broadcast %c-1640531527_i32 : i32 to vector<10x128xi32>
    %22 = arith.muli %18, %21 : vector<10x128xi32>
    %23 = vector.broadcast %20 : i32 to vector<10x128xi32>
    %24 = arith.addi %23, %22 : vector<10x128xi32>
    %c-2049221013_i32 = arith.constant -2049221013 : i32
    %25 = vector.broadcast %c-2049221013_i32 : i32 to vector<10x128xi32>
    %26 = arith.muli %19, %25 : vector<10x128xi32>
    %27 = arith.addi %24, %26 : vector<10x128xi32>
    %c16_i32 = arith.constant 16 : i32
    %28 = vector.broadcast %c16_i32 : i32 to vector<10x128xi32>
    %29 = arith.shrsi %27, %28 : vector<10x128xi32>
    %c65535_i32 = arith.constant 65535 : i32
    %30 = vector.broadcast %c65535_i32 : i32 to vector<10x128xi32>
    %31 = arith.andi %29, %30 : vector<10x128xi32>
    %32 = arith.xori %27, %31 : vector<10x128xi32>
    %c2146121005_i32 = arith.constant 2146121005 : i32
    %33 = vector.broadcast %c2146121005_i32 : i32 to vector<10x128xi32>
    %34 = arith.muli %32, %33 : vector<10x128xi32>
    %c15_i32 = arith.constant 15 : i32
    %35 = vector.broadcast %c15_i32 : i32 to vector<10x128xi32>
    %36 = arith.shrsi %34, %35 : vector<10x128xi32>
    %c131071_i32 = arith.constant 131071 : i32
    %37 = vector.broadcast %c131071_i32 : i32 to vector<10x128xi32>
    %38 = arith.andi %36, %37 : vector<10x128xi32>
    %39 = arith.xori %34, %38 : vector<10x128xi32>
    %c-2073777525_i32 = arith.constant -2073777525 : i32
    %40 = vector.broadcast %c-2073777525_i32 : i32 to vector<10x128xi32>
    %41 = arith.muli %39, %40 : vector<10x128xi32>
    %c16_i32_13 = arith.constant 16 : i32
    %42 = vector.broadcast %c16_i32_13 : i32 to vector<10x128xi32>
    %43 = arith.shrsi %41, %42 : vector<10x128xi32>
    %c65535_i32_14 = arith.constant 65535 : i32
    %44 = vector.broadcast %c65535_i32_14 : i32 to vector<10x128xi32>
    %45 = arith.andi %43, %44 : vector<10x128xi32>
    %46 = arith.xori %41, %45 : vector<10x128xi32>
    %c-1288490189_i32 = arith.constant -1288490189 : i32
    %47 = vector.broadcast %c-1288490189_i32 : i32 to vector<10x128xi32>
    %48 = arith.cmpi sge, %46, %47 : vector<10x128xi32>
    %cst_15 = arith.constant 1.250000e+00 : f32
    %49 = vector.broadcast %cst_15 : f32 to vector<10x128xf32>
    %50 = arith.mulf %14, %49 : vector<10x128xf32>
    %cst_16 = arith.constant 0.000000e+00 : f32
    %51 = vector.broadcast %cst_16 : f32 to vector<10x128xf32>
    %52 = arith.select %48, %50, %51 : vector<10x128xi1>, vector<10x128xf32>
    %c0_17 = arith.constant 0 : index
    %c0_18 = arith.constant 0 : index
    %53 = vector.load %arg7[%c0_17, %c0_18] : memref<3x10xf32, #tpu.memory_space<vmem>>, vector<3x10xf32>
    %cst_19 = arith.constant dense<0.000000e+00> : vector<3x128xf32>
    %54 = tpu.matmul %53, %52, %cst_19 {dimension_numbers = #tpu.dot_dimension_numbers<[1], [0], [0], [1], [0, 0, 1, 1], [], []>} : vector<3x10xf32>, vector<10x128xf32>, vector<3x128xf32> -> vector<3x128xf32>
    %c0_20 = arith.constant 0 : index
    %c0_21 = arith.constant 0 : index
    %55 = vector.load %arg8[%c0_20, %c0_21] : memref<3x1xf32, #tpu.memory_space<vmem>>, vector<3x1xf32>
    %56 = vector.broadcast %55 : vector<3x1xf32> to vector<3x128xf32>
    %57 = arith.addf %54, %56 : vector<3x128xf32>
    %c0_22 = arith.constant 0 : index
    %c0_23 = arith.constant 0 : index
    %58 = vector.load %arg9[%c0_22, %c0_23] : memref<3x128xf32, #tpu.memory_space<vmem>>, vector<3x128xf32>
    tpu.vector_store %arg9[%c0_22, %c0_23], %57 {strides = array<i32>} : memref<3x128xf32, #tpu.memory_space<vmem>>, vector<3x128xf32>,
    return
  }
  func.func @transform_0(%arg0: i32, %arg1: memref<1xi32, #tpu.memory_space<smem>>) -> (i32, i32) {
    %c0_i32 = arith.constant 0 : i32
    %c0_i32_0 = arith.constant 0 : i32
    return %c0_i32, %arg0 : i32, i32
  }
  func.func @transform_1(%arg0: i32, %arg1: memref<1xi32, #tpu.memory_space<smem>>) -> (i32, i32) {
    %c0_i32 = arith.constant 0 : i32
    %c0_i32_0 = arith.constant 0 : i32
    %c0_i32_1 = arith.constant 0 : i32
    return %c0_i32, %c0_i32_0 : i32, i32
  }
  func.func @transform_2(%arg0: i32, %arg1: memref<1xi32, #tpu.memory_space<smem>>) -> (i32, i32) {
    %c0_i32 = arith.constant 0 : i32
    %c0_i32_0 = arith.constant 0 : i32
    %c0_i32_1 = arith.constant 0 : i32
    return %c0_i32, %c0_i32_0 : i32, i32
  }
  func.func @transform_3(%arg0: i32, %arg1: memref<1xi32, #tpu.memory_space<smem>>) -> (i32, i32) {
    %c0_i32 = arith.constant 0 : i32
    %c0_i32_0 = arith.constant 0 : i32
    %c0_i32_1 = arith.constant 0 : i32
    return %c0_i32, %c0_i32_0 : i32, i32
  }
  func.func @transform_4(%arg0: i32, %arg1: memref<1xi32, #tpu.memory_space<smem>>) -> (i32, i32) {
    %c0_i32 = arith.constant 0 : i32
    %c0_i32_0 = arith.constant 0 : i32
    %c0_i32_1 = arith.constant 0 : i32
    return %c0_i32, %c0_i32_0 : i32, i32
  }
  func.func @transform_5(%arg0: i32, %arg1: memref<1xi32, #tpu.memory_space<smem>>) -> (i32, i32) {
    %c0_i32 = arith.constant 0 : i32
    %c0_i32_0 = arith.constant 0 : i32
    %c0_i32_1 = arith.constant 0 : i32
    return %c0_i32, %c0_i32_0 : i32, i32
  }
  func.func @transform_6(%arg0: i32, %arg1: memref<1xi32, #tpu.memory_space<smem>>) -> (i32, i32) {
    %c0_i32 = arith.constant 0 : i32
    %c0_i32_0 = arith.constant 0 : i32
    %c0_i32_1 = arith.constant 0 : i32
    return %c0_i32, %c0_i32_0 : i32, i32
  }
  func.func @transform_7(%arg0: i32, %arg1: memref<1xi32, #tpu.memory_space<smem>>) -> (i32, i32) {
    %c0_i32 = arith.constant 0 : i32
    %c0_i32_0 = arith.constant 0 : i32
    return %c0_i32, %arg0 : i32, i32
  }
}

</mosaic_0001>

<llo_original>
// kernel: tpu_custom_call.1
$region0: #{tpu_custom_call.1}
  #allocation0 [shape = 'u32[]', space=smem, size = 0x4, offset = 0x4, fixed_abs, tag = 'smem constant byte address 0x4 - core index']
  #allocation1 [shape = 'u32[72,128]{1,0:T(1,128)}', space=vmem, size = 0x9000, scoped, tag = 'internal scratch']
  #allocation2 [shape = 's32[1]{0}', space=sflag, size = 0x4, scoped, tag = 'scoped memory for tpu_custom_call.1']
  #allocation3 [shape = 's32[1]{0:T(128)S(6)}', space=smem, size = 0x200, scoped, tag = 'prefetched SMEM operand 0']
  %s0 = inlined_call_operand.<no memory space> [shape: s32[1], index: 0, kind: input, shape index: {}]
  %s1 = inlined_call_operand.vmem [shape: f32[4,128], index: 1, kind: input, shape index: {}]
  %s2 = inlined_call_operand.vmem [shape: f32[10,4], index: 2, kind: input, shape index: {}]
  %s3 = inlined_call_operand.vmem [shape: f32[10,1], index: 3, kind: input, shape index: {}]
  %s4 = inlined_call_operand.vmem [shape: f32[10,10], index: 4, kind: input, shape index: {}]
  %s5 = inlined_call_operand.vmem [shape: f32[10,1], index: 5, kind: input, shape index: {}]
  %s6 = inlined_call_operand.vmem [shape: f32[3,10], index: 6, kind: input, shape index: {}]
  %s7 = inlined_call_operand.vmem [shape: f32[3,1], index: 7, kind: input, shape index: {}]
  %s8 = inlined_call_operand.hbm [shape: f32[3,128], index: 8, kind: output, shape index: {}]
  %s9 = sld [smem:[#allocation0]]
  $region38: #{tpu_custom_call.1} parent=0
    _
  %s11 = ssub.s32 1, %s9
  %s12 = scalar_select 0, %s11, %s9
  %13 = sst [smem:[#allocation3]] %s0
  $region1: #{tpu_custom_call.1} parent=0
    #allocation4 [shape = 'u8[2048]{0}', space=vmem, size = 0x800, scoped, tag = 'output window, operand 0, single buffered']
    #allocation5 [shape = 's32[1]{0}', space=sflag, size = 0x4, scoped, tag = 'scoped memory for tpu_custom_call.1']
    %14 = vsyncpa [#allocation5], 0
    // Predicated region
    $region2: #{tpu_custom_call.1} parent=1 // pred_check
      _
    $region3: #{tpu_custom_call.1} parent=1 // pred_check_branch
      %16 = sbr.rel (0) target = $region5
    $region4: #{tpu_custom_call.1} parent=1 // pred_region
      _
    $region5: #{tpu_custom_call.1} parent=1 // pred_fallthru
      _
    // Predicated region
    $region6: #{tpu_custom_call.1} parent=1 // pred_check
      _
    $region7: #{tpu_custom_call.1} parent=1 // pred_check_branch
      %18 = sbr.rel (0) target = $region9
    $region8: #{tpu_custom_call.1} parent=1 // pred_region
      _
    $region9: #{tpu_custom_call.1} parent=1 // pred_fallthru
      _
    // Predicated region
    $region10: #{tpu_custom_call.1} parent=1 // pred_check
      _
    $region11: #{tpu_custom_call.1} parent=1 // pred_check_branch
      %20 = sbr.rel (0) target = $region13
    $region12: #{tpu_custom_call.1} parent=1 // pred_region
      _
    $region13: #{tpu_custom_call.1} parent=1 // pred_fallthru
      _
    // Predicated region
    $region14: #{tpu_custom_call.1} parent=1 // pred_check
      _
    $region15: #{tpu_custom_call.1} parent=1 // pred_check_branch
      %22 = sbr.rel (0) target = $region17
    $region16: #{tpu_custom_call.1} parent=1 // pred_region
      _
    $region17: #{tpu_custom_call.1} parent=1 // pred_fallthru
      _
    // Predicated region
    $region18: #{tpu_custom_call.1} parent=1 // pred_check
      _
    $region19: #{tpu_custom_call.1} parent=1 // pred_check_branch
      %24 = sbr.rel (0) target = $region21
    $region20: #{tpu_custom_call.1} parent=1 // pred_region
      _
    $region21: #{tpu_custom_call.1} parent=1 // pred_fallthru
      _
    // Predicated region
    $region22: #{tpu_custom_call.1} parent=1 // pred_check
      _
    $region23: #{tpu_custom_call.1} parent=1 // pred_check_branch
      %26 = sbr.rel (0) target = $region25
    $region24: #{tpu_custom_call.1} parent=1 // pred_region
      _
    $region25: #{tpu_custom_call.1} parent=1 // pred_fallthru
      _
    // Predicated region
    $region26: #{tpu_custom_call.1} parent=1 // pred_check
      _
    $region27: #{tpu_custom_call.1} parent=1 // pred_check_branch
      %28 = sbr.rel (0) target = $region29
    $region28: #{tpu_custom_call.1} parent=1 // pred_region
      _
    $region29: #{tpu_custom_call.1} parent=1 // pred_fallthru
      _
    %v29 = vld [vmem:[%s1] sm:$0xf]
    %v30 = vld [vmem:[%s2] sm:$0xff]
    %v31 = vld [vmem:[%s2 + $0x8] sm:$0x3]
    %v32 = vld [vmem:[%s3] sm:$0xff]
    %v33 = vld [vmem:[%s3 + $0x8] sm:$0x3]
    %35 = vset.pattern.permute.xlu0 0
    %36 = vperm.xlu0 %35, %v32
    %v37 = vpop.permute.xlu0 %36
    %40 = vset.pattern.permute.xlu0 0
    %41 = vperm.xlu0 %40, %v33
    %v42 = vpop.permute.xlu0 %41
    %vm44 = vcmask 31744
    %v46 = vsel %vm44, %v30, 0
    %v49 = vsel %vm44, %v31, 0
    %vm51 = vcmask 1043456
    %v53 = vsel %vm51, %v29, 0
    %55 = vmatpush.msra.mxu0 0.0
    %56 = vmatpush.msra.mxu0 0.0
    %57 = vmatpush.msra.mxu0 0.0
    %58 = vmatpush.msra.mxu0 0.0
    %59 = vmatpush.msra.mxu0 0.0
    %60 = vmatpush.msra.mxu0 0.0
    %61 = vmatpush.msra.mxu0 0.0
    %62 = vmatpush.msra.mxu0 0.0
    %63 = vmatpush.msra.mxu0 0.0
    %64 = vmatpush.msra.mxu0 0.0
    %65 = vmatpush.msra.mxu0 0.0
    %66 = vmatpush.msra.mxu0 0.0
    %67 = vmatpush.msra.mxu0 0.0
    %68 = vmatpush.msra.mxu0 0.0
    %69 = vmatpush.msra.mxu0 0.0
    %70 = vmatpush.msra.mxu0 %v53
    %71 = vmatmul.f32.gmra.mxu0 %v46
    %v72 = vpop.f32.mrf.mxu0
    %v73 = vadd.f32 %v37, %v72
    %74 = vmatmul.f32.gmra.mxu0 %v49
    %v75 = vpop.f32.mrf.mxu0
    %v76 = vadd.f32 %v42, %v75
    %77 = vdwg.mxu0
    %v78 = vmax.f32 %v73, 0.0
    %v79 = vmax.f32 %v76, 0.0
    %v80 = vld [vmem:[%s4] sm:$0xff]
    %v81 = vld [vmem:[%s4 + $0x8] sm:$0x3]
    %v82 = vld [vmem:[%s5] sm:$0xff]
    %v83 = vld [vmem:[%s5 + $0x8] sm:$0x3]
    %85 = vset.pattern.permute.xlu0 0
    %86 = vperm.xlu0 %85, %v82
    %v87 = vpop.permute.xlu0 %86
    %90 = vset.pattern.permute.xlu0 0
    %91 = vperm.xlu0 %90, %v83
    %v92 = vpop.permute.xlu0 %91
    %vm94 = vcmask 80896
    %v96 = vsel %vm94, %v80, 0
    %v99 = vsel %vm94, %v81, 0
    %vm101 = vcmask 1041408
    %v103 = vsel %vm101, %v79, 0
    %105 = vmatpush.msra.mxu0 0.0
    %106 = vmatpush.msra.mxu0 0.0
    %107 = vmatpush.msra.mxu0 0.0
    %108 = vmatpush.msra.mxu0 0.0
    %109 = vmatpush.msra.mxu0 0.0
    %110 = vmatpush.msra.mxu0 0.0
    %111 = vmatpush.msra.mxu0 0.0
    %112 = vmatpush.msra.mxu0 0.0
    %113 = vmatpush.msra.mxu0 0.0
    %114 = vmatpush.msra.mxu0 0.0
    %115 = vmatpush.msra.mxu0 0.0
    %116 = vmatpush.msra.mxu0 0.0
    %117 = vmatpush.msra.mxu0 0.0
    %118 = vmatpush.msra.mxu0 0.0
    %119 = vmatpush.msra.mxu0 %v103
    %120 = vmatpush.msra.mxu0 %v78
    %121 = vmatmul.f32.gmra.mxu0 %v96
    %v122 = vpop.f32.mrf.mxu0
    %v123 = vadd.f32 %v87, %v122
    %124 = vmatmul.f32.gmra.mxu0 %v99
    %v125 = vpop.f32.mrf.mxu0
    %v126 = vadd.f32 %v92, %v125
    %127 = vdwg.mxu0
    %v128 = vmax.f32 %v123, 0.0
    %v129 = vmax.f32 %v126, 0.0
    %s130 = smul.u32 0, 128
    %v131 = vlaneseq
    %v132 = vand.u32 %v131, 127
    %v133 = vstv %s130
    %v134 = vadd.s32 %v133, %v132
    %v135 = vlaneseq
    %v136 = vshrl.u32 %v135, 7
    %v137 = vadd.s32 %v136, 8
    %s138 = sld [smem:[#allocation3]]
    %v139 = vmul.u32 %v134, 2654435769
    %v140 = vstv %s138
    %v141 = vadd.s32 %v140, %v139
    %v142 = vmul.u32 %v136, 2245746283
    %v143 = vmul.u32 %v137, 2245746283
    %v144 = vadd.s32 %v141, %v142
    %v145 = vadd.s32 %v141, %v143
    %v146 = vshra.s32 %v144, 16
    %v147 = vshra.s32 %v145, 16
    %v148 = vand.u32 %v146, 65535
    %v149 = vand.u32 %v147, 65535
    %v150 = vxor.u32 %v144, %v148
    %v151 = vxor.u32 %v145, %v149
    %v152 = vmul.u32 %v150, 2146121005
    %v153 = vmul.u32 %v151, 2146121005
    %v154 = vshra.s32 %v152, 15
    %v155 = vshra.s32 %v153, 15
    %v156 = vand.u32 %v154, 131071
    %v157 = vand.u32 %v155, 131071
    %v158 = vxor.u32 %v152, %v156
    %v159 = vxor.u32 %v153, %v157
    %v160 = vmul.u32 %v158, 2221189771
    %v161 = vmul.u32 %v159, 2221189771
    %v162 = vshra.s32 %v160, 16
    %v163 = vshra.s32 %v161, 16
    %v164 = vand.u32 %v162, 65535
    %v165 = vand.u32 %v163, 65535
    %v166 = vxor.u32 %v160, %v164
    %v167 = vxor.u32 %v161, %v165
    %vm168 = vcmp.ge.s32.totalorder %v166, 3006477107
    %vm169 = vcmp.ge.s32.totalorder %v167, 3006477107
    %v170 = vmul.f32 %v128, 1.25
    %v171 = vmul.f32 %v129, 1.25
    %v172 = vsel %vm168, %v170, 0.0
    %v173 = vsel %vm169, %v171, 0.0
    %v174 = vld [vmem:[%s6] sm:$0x7]
    %v175 = vld [vmem:[%s7] sm:$0x7]
    %177 = vset.pattern.permute.xlu0 0
    %178 = vperm.xlu0 %177, %v175
    %v179 = vpop.permute.xlu0 %178
    %v182 = vsel %vm94, %v174, 0
    %v185 = vsel %vm101, %v173, 0
    %187 = vmatpush.msra.mxu0 0.0
    %188 = vmatpush.msra.mxu0 0.0
    %189 = vmatpush.msra.mxu0 0.0
    %190 = vmatpush.msra.mxu0 0.0
    %191 = vmatpush.msra.mxu0 0.0
    %192 = vmatpush.msra.mxu0 0.0
    %193 = vmatpush.msra.mxu0 0.0
    %194 = vmatpush.msra.mxu0 0.0
    %195 = vmatpush.msra.mxu0 0.0
    %196 = vmatpush.msra.mxu0 0.0
    %197 = vmatpush.msra.mxu0 0.0
    %198 = vmatpush.msra.mxu0 0.0
    %199 = vmatpush.msra.mxu0 0.0
    %200 = vmatpush.msra.mxu0 0.0
    %201 = vmatpush.msra.mxu0 %v185
    %202 = vmatpush.msra.mxu0 %v172
    %203 = vmatmul.f32.gmra.mxu0 %v182
    %v204 = vpop.f32.mrf.mxu0
    %v205 = vadd.f32 %v179, %v204
    %206 = vdwg.mxu0
    %207 = vst [vmem:[#allocation4] sm:$0x7] %v205
    // Predicated region
    $region30: #{tpu_custom_call.1} parent=1 // pred_check
      _
    $region31: #{tpu_custom_call.1} parent=1 // pred_check_branch
      %209 = sbr.rel (0) target = $region33
    $region32: #{tpu_custom_call.1} parent=1 // pred_region
      %211 = vsyncadd [#allocation5], 0
      %s213 = sshll.u32 [#allocation4], 4
      %s214 = int_to_ptr.vmem [resolvable:$true] %s213
      %s215 = sshll.u32 %s8, 4
      %s216 = int_to_ptr.hbm [resolvable:$true] %s215
      %218 = dma.vmem_to_hbm [thread:$0]  %s214, 64, %s216, [#allocation5]
    $region33: #{tpu_custom_call.1} parent=1 // pred_fallthru
      _
    // Predicated region
    $region34: #{tpu_custom_call.1} parent=1 // pred_check
      _
    $region35: #{tpu_custom_call.1} parent=1 // pred_check_branch
      %220 = sbr.rel (0) target = $region37
    $region36: #{tpu_custom_call.1} parent=1 // pred_region
      %222 = dma.done [#allocation5], 64
    $region37: #{tpu_custom_call.1} parent=1 // pred_fallthru
      _
    %223 = vsyncpa [#allocation5], 1

</llo_original>
